<compile_context>
chip_gen: v5e
topology: v5e:2x2
jax: 0.10.0
libtpu: 0.0.40
codegen_flags: <defaults>
</compile_context>

<pallas_src>
import functools

import jax
import jax.numpy as jnp
from jax.experimental import pallas as pl
from jax.experimental.pallas import tpu as pltpu


# ----------------------------------------------------------------------------
# Synthetic config (stands in for `cfg`)
# ----------------------------------------------------------------------------
CFG = dict(
    total_bones=4,
    n_samples=16,             # cfg.N_samples
    perturb=0.0,              # deterministic: no stratified sampling
    voxelsize=(0.1, 0.1, 0.1),
    mweight_embedding_size=16,
    mweight_volume_size=8,
    cnl_mlp_depth=6,
    cnl_mlp_width=32,
    cnl_mlp_skips=(4,),
    multires=4,               # cfg.canonical_mlp.multires
    non_rigid_kick_in_iter=1000,
)


def _pick_tile(n, candidates=(2048, 1024, 512, 256, 128)):
    """Largest tile (pref. giving >=2 grid steps) that divides n."""
    for t in candidates:
        if n % t == 0 and n // t >= 2:
            return t
    for t in candidates:
        if n % t == 0:
            return t
    return n


# ----------------------------------------------------------------------------
# Kernel 1: SparseConvNet — dense 5x5x5 all-ones conv (pad=2, stride=1, no bias)
# ----------------------------------------------------------------------------
def _dilate5_kernel(vp_ref, out_ref):
    d, h, w = out_ref.shape
    vp = vp_ref[...]                                     # (D+4, H+4, W+4)
    s = vp[0:d]
    for i in range(1, 5):                                # separable box sum (D)
        s = s + vp[i:i + d]
    s2 = s[:, 0:h, :]
    for j in range(1, 5):                                # (H)
        s2 = s2 + s[:, j:j + h, :]
    s3 = s2[:, :, 0:w]
    for k in range(1, 5):                                # (W)
        s3 = s3 + s2[:, :, k:k + w]
    out_ref[...] = s3


def sparse_convnet_dense(vol):
    # TODO(synk): tile over D with a halo of 2 (parallel grid axis) for
    # production-size volumes so it fits v7x's 64 MiB VMEM and uses both TCs.
    d, h, w = vol.shape
    vpad = jnp.pad(vol, ((2, 2), (2, 2), (2, 2)))
    return pl.pallas_call(
        _dilate5_kernel,
        out_shape=jax.ShapeDtypeStruct((d, h, w), jnp.float32),
        grid=(1,),
        in_specs=[pl.BlockSpec((d + 4, h + 4, w + 4), lambda i: (0, 0, 0))],
        out_specs=pl.BlockSpec((d, h, w), lambda i: (0, 0, 0)),
    )(vpad)


# ----------------------------------------------------------------------------
# Kernel 2: canonical MLP over points, feature-major [C, N]
#   x_embed is pre-padded to (width, N); weights are stacked (L, width, width)
#   bf16 with zero-padded columns; output has 8 rows (rows 0:3 are the raws).
# ----------------------------------------------------------------------------
def _cnl_mlp_kernel(x_ref, mask_ref, w_ref, b_ref, wsx_ref, wo_ref, bo_ref,
                    out_ref, *, depth, skip):
    x = x_ref[...].astype(jnp.bfloat16)                  # (32, T)
    h = x
    for i in range(depth):
        z = jnp.dot(w_ref[i], h, preferred_element_type=jnp.float32) + b_ref[i]
        if i == skip:
            # skip layer pre-split (no in-kernel concatenate):
            #   relu(Wh @ h + Wx @ x_embed + b)
            z = z + jnp.dot(wsx_ref[...], x, preferred_element_type=jnp.float32)
        h = jnp.maximum(z, 0.0).astype(jnp.bfloat16)
    raw = (jnp.dot(wo_ref[...], h, preferred_element_type=jnp.float32)
           + bo_ref[...])                                # (8, T) f32

    # Points rejected by the vertex filter keep raw == 0 (the reference only
    # scatters MLP results into the nonzero indices of an all-zero buffer).
    out_ref[...] = jnp.where(mask_ref[...] > 0.5, raw, 0.0)


def cnl_mlp_pallas(x_embed_p, mask_row, params):
    n = x_embed_p.shape[1]
    tile = _pick_tile(n)
    assert n % tile == 0

    w = params['mlp_w']            # (L, 32, 32) bf16
    b = params['mlp_b']            # (L, 32, 1)  f32
    wsx = params['mlp_w_skip_x']   # (32, 32)    bf16
    wo = params['mlp_w_out']       # (8, 32)     bf16
    bo = params['mlp_b_out']       # (8, 1)      f32

    kernel = functools.partial(
        _cnl_mlp_kernel,
        depth=CFG['cnl_mlp_depth'],
        skip=CFG['cnl_mlp_skips'][0],
    )
    return pl.pallas_call(
        kernel,
        out_shape=jax.ShapeDtypeStruct((8, n), jnp.float32),
        grid=(n // tile,),
        in_specs=[
            pl.BlockSpec((x_embed_p.shape[0], tile), lambda i: (0, i)),
            pl.BlockSpec((1, tile), lambda i: (0, i)),
            pl.BlockSpec(w.shape, lambda i: (0, 0, 0)),
            pl.BlockSpec(b.shape, lambda i: (0, 0, 0)),
            pl.BlockSpec(wsx.shape, lambda i: (0, 0)),
            pl.BlockSpec(wo.shape, lambda i: (0, 0)),
            pl.BlockSpec(bo.shape, lambda i: (0, 0)),
        ],
        out_specs=pl.BlockSpec((8, tile), lambda i: (0, i)),
        compiler_params=pltpu.CompilerParams(dimension_semantics=("parallel",)),
    )(x_embed_p, mask_row, w, b, wsx, wo, bo)


# ----------------------------------------------------------------------------
# Kernel 3: volume rendering (_raw2outputs_norawmask), (S, R) layout
# ----------------------------------------------------------------------------
def _raw2out_kernel(mcum_ref, raw_ref, dists_ref, z_ref, bg_ref,
                    rgb_ref, acc_ref, depth_ref):
    raw = raw_ref[...]                                   # (4, S, RT) f32
    dists = dists_ref[...]                               # (S, RT) pre-scaled
    z = z_ref[...]                                       # (S, RT)

    sigma = jnp.maximum(raw[3], 0.0)                     # relu(raw[...,3])
    alpha = 1.0 - jnp.exp(-sigma * dists)                # arg <= 0: no overflow
    alpha = jnp.clip(alpha, 0.0, 1.0)

    # exclusive cumprod(1 - alpha + 1e-10) == exp(strict-lower cumsum of logs),
    # realized as a (S,S)@(S,RT) matmul on the MXU with rays lane-dense.
    lg = jnp.log(jnp.maximum(1.0 - alpha, 0.0) + 1e-10)
    trans = jnp.exp(jnp.dot(mcum_ref[...], lg, preferred_element_type=jnp.float32))
    weights = alpha * trans                              # (S, RT)

    # overflow-free sigmoid
    x = raw[0:3]                                         # (3, S, RT)
    e = jnp.exp(-jnp.abs(x))
    rgb = jnp.where(x >= 0, 1.0 / (1.0 + e), e / (1.0 + e))

    rgb_map = jnp.sum(weights[None, :, :] * rgb, axis=1)          # (3, RT)
    acc_map = jnp.sum(weights, axis=0, keepdims=True)             # (1, RT)
    depth_map = jnp.sum(weights * z, axis=0, keepdims=True)       # (1, RT)

    rgb_ref[...] = rgb_map + (1.0 - acc_map) * bg_ref[...]        # bg already /255
    acc_ref[...] = acc_map
    depth_ref[...] = depth_map


def raw2outputs(raw_sr, dists_sr, z_sr, bgcolor):
    # raw_sr (4, S, R), dists_sr (S, R), z_sr (S, R)
    _, s, r = raw_sr.shape
    rt = _pick_tile(r, candidates=(512, 256, 128))
    assert r % rt == 0
    # hoisted strictly-lower-triangular 0/1 matrix (exclusive cumsum of logs)
    mcum = (jnp.arange(s)[:, None] > jnp.arange(s)[None, :]).astype(jnp.float32)
    bg = (bgcolor.reshape(3, 1) / 255.0).astype(jnp.float32)
    return pl.pallas_call(
        _raw2out_kernel,
        out_shape=(jax.ShapeDtypeStruct((3, r), jnp.float32),
                   jax.ShapeDtypeStruct((1, r), jnp.float32),
                   jax.ShapeDtypeStruct((1, r), jnp.float32)),
        grid=(r // rt,),
        in_specs=[
            pl.BlockSpec((s, s), lambda i: (0, 0)),
            pl.BlockSpec((4, s, rt), lambda i: (0, 0, i)),
            pl.BlockSpec((s, rt), lambda i: (0, i)),
            pl.BlockSpec((s, rt), lambda i: (0, i)),
            pl.BlockSpec((3, 1), lambda i: (0, 0)),
        ],
        out_specs=(pl.BlockSpec((3, rt), lambda i: (0, i)),
                   pl.BlockSpec((1, rt), lambda i: (0, i)),
                   pl.BlockSpec((1, rt), lambda i: (0, i))),
        compiler_params=pltpu.CompilerParams(dimension_semantics=("parallel",)),
    )(mcum, raw_sr, dists_sr, z_sr, bg)


# ----------------------------------------------------------------------------
# Plain-JAX glue: grid_sample, motion basis, weight-volume decoder, filter
# ----------------------------------------------------------------------------
def _grid_sample_3d_nearest(vol, coords):
    # vol [D,H,W]; coords [N,3] = (x,y,z) in [-1,1]; nearest, align_corners=False
    d, h, w = vol.shape
    x, y, z = coords[:, 0], coords[:, 1], coords[:, 2]
    ix = ((x + 1.0) * w - 1.0) * 0.5
    iy = ((y + 1.0) * h - 1.0) * 0.5
    iz = ((z + 1.0) * d - 1.0) * 0.5
    ixn, iyn, izn = jnp.round(ix), jnp.round(iy), jnp.round(iz)
    inb = ((ixn >= 0) & (ixn <= w - 1) & (iyn >= 0) & (iyn <= h - 1)
           & (izn >= 0) & (izn <= d - 1))
    xi = jnp.clip(ixn, 0, w - 1).astype(jnp.int32)
    yi = jnp.clip(iyn, 0, h - 1).astype(jnp.int32)
    zi = jnp.clip(izn, 0, d - 1).astype(jnp.int32)
    return vol[zi, yi, xi] * inb.astype(vol.dtype)


def _grid_sample_3d_trilinear(vol, coords):
    # vol [D,H,W]; coords [N,3] = (x,y,z) in [-1,1]; bilinear, align_corners=True
    d, h, w = vol.shape
    x, y, z = coords[:, 0], coords[:, 1], coords[:, 2]
    ix = (x + 1.0) * 0.5 * (w - 1)
    iy = (y + 1.0) * 0.5 * (h - 1)
    iz = (z + 1.0) * 0.5 * (d - 1)
    x0, y0, z0 = jnp.floor(ix), jnp.floor(iy), jnp.floor(iz)
    out = jnp.zeros(x.shape, vol.dtype)
    for dz in (0, 1):
        for dy in (0, 1):
            for dx in (0, 1):
                cx, cy, cz = x0 + dx, y0 + dy, z0 + dz
                wgt = ((1.0 - jnp.abs(ix - cx)) * (1.0 - jnp.abs(iy - cy))
                       * (1.0 - jnp.abs(iz - cz)))
                inb = ((cx >= 0) & (cx <= w - 1) & (cy >= 0) & (cy <= h - 1)
                       & (cz >= 0) & (cz <= d - 1))
                xi = jnp.clip(cx, 0, w - 1).astype(jnp.int32)
                yi = jnp.clip(cy, 0, h - 1).astype(jnp.int32)
                zi = jnp.clip(cz, 0, d - 1).astype(jnp.int32)
                out = out + wgt * vol[zi, yi, xi] * inb.astype(vol.dtype)
    return out


def _inv3x3(a):
    # closed-form adjugate inverse of (..., 3, 3)
    a00, a01, a02 = a[..., 0, 0], a[..., 0, 1], a[..., 0, 2]
    a10, a11, a12 = a[..., 1, 0], a[..., 1, 1], a[..., 1, 2]
    a20, a21, a22 = a[..., 2, 0], a[..., 2, 1], a[..., 2, 2]
    det = (a00 * (a11 * a22 - a12 * a21)
           - a01 * (a10 * a22 - a12 * a20)
           + a02 * (a10 * a21 - a11 * a20))
    det = jnp.where(jnp.abs(det) < 1e-12, 1e-12, det)
    inv = jnp.stack([
        jnp.stack([a11 * a22 - a12 * a21, a02 * a21 - a01 * a22,
                   a01 * a12 - a02 * a11], axis=-1),
        jnp.stack([a12 * a20 - a10 * a22, a00 * a22 - a02 * a20,
                   a02 * a10 - a00 * a12], axis=-1),
        jnp.stack([a10 * a21 - a11 * a20, a01 * a20 - a00 * a21,
                   a00 * a11 - a01 * a10], axis=-1),
    ], axis=-2)
    return inv / det[..., None, None]


def motion_basis_computer(dst_Rs, dst_Ts, cnl_gtfms):
    # TODO(synk): the reference uses a general 4x4 inverse; cnl_gtfms are
    # affine [A|t;0 1] so the closed-form affine inverse below is equivalent.
    bsz, n_bones = dst_Rs.shape[:2]
    g = jnp.zeros((bsz, n_bones, 4, 4), jnp.float32)
    g = g.at[:, :, :3, :3].set(dst_Rs)
    g = g.at[:, :, :3, 3].set(dst_Ts)
    g = g.at[:, :, 3, 3].set(1.0)

    a = cnl_gtfms[..., :3, :3]
    t = cnl_gtfms[..., :3, 3]
    a_inv = _inv3x3(a)
    t_inv = -jnp.einsum('...ij,...j->...i', a_inv, t)
    inv = jnp.zeros_like(cnl_gtfms)
    inv = inv.at[..., :3, :3].set(a_inv)
    inv = inv.at[..., :3, 3].set(t_inv)
    inv = inv.at[..., 3, 3].set(1.0)

    f = jnp.matmul(g, inv)
    return f[:, :, :3, :3], f[:, :, :3, 3]


def mweight_vol_decoder(params, motion_weights_priors):
    # TODO(synk): the original cfg-loaded decoder is a ConvTranspose3d stack
    # (ConvDecoder3D); a dense linear decode of the learned constant embedding
    # stands in; the softmax(logits + log(priors), channel) is exact.
    logits = params['mw_embedding'] @ params['mw_dec_w'] + params['mw_dec_b']
    b1 = CFG['total_bones'] + 1
    v = CFG['mweight_volume_size']
    logits = logits.reshape(1, b1, v, v, v)
    return jax.nn.softmax(logits + jnp.log(motion_weights_priors), axis=1)


def vertices_filter_mask(pos_flat, vertices, out_sh, dst_bbox_min):
    d, h, w = out_sh
    vol = jnp.zeros((d, h, w), jnp.float32)
    vol = vol.at[vertices[:, 0], vertices[:, 1], vertices[:, 2]].add(1.0)
    vol = sparse_convnet_dense(vol)                       # Pallas 5^3 ones conv
    vs = jnp.asarray(CFG['voxelsize'], jnp.float32)
    sh = jnp.asarray(out_sh, jnp.float32)
    pts_voxel = (pos_flat - dst_bbox_min) / vs
    pts_voxel = pts_voxel / (sh - 1.0) * 2.0 - 1.0
    grid = pts_voxel[:, [2, 1, 0]]                        # (x, y, z)
    vals = _grid_sample_3d_nearest(vol, grid)             # nearest, a_c=False
    # torch.nonzero + scatter is replaced by a 0/1 mask; every downstream op is
    # pointwise over samples so the result is identical.
    return (vals != 0).astype(jnp.float32)


# ----------------------------------------------------------------------------
# Rendering pipeline
# ----------------------------------------------------------------------------
def _render_rays(params, rays_o, rays_d, near, far, motion_scale_Rs, motion_Ts,
                 motion_weights_vol, cnl_bbox_min_xyz, cnl_bbox_scale_xyz,
                 bgcolor, vertices, out_sh, dst_bbox):
    n_rays = rays_o.shape[0]
    n_samp = CFG['n_samples']
    width = CFG['cnl_mlp_width']

    t_vals = jnp.linspace(0.0, 1.0, n_samp)
    # sample-major (S, R) layout keeps rays on the lane axis end-to-end
    z_sr = (near.reshape(1, -1) * (1.0 - t_vals)[:, None]
            + far.reshape(1, -1) * t_vals[:, None])                   # (S, R)
    # cfg.perturb == 0.0 -> no stratified sampling (deterministic)

    pts = rays_o[None, :, :] + rays_d[None, :, :] * z_sr[:, :, None]  # (S, R, 3)
    pos_flat = pts.reshape(-1, 3)                                     # (S*R, 3)
    n_pts = pos_flat.shape[0]

    # vertex filter (SparseConvNet + nearest grid_sample)
    fmask = vertices_filter_mask(pos_flat, vertices, out_sh, dst_bbox[0])

    # per-bone rigid transform + motion-weight trilinear sampling
    # TODO(synk): the grid_sample gather and the tiny per-bone blend / embed
    # stay in XLA; the MLP that dominates the FLOPs runs in the Pallas kernel.
    pos_bones = (jnp.einsum('bij,nj->bni', motion_scale_Rs, pos_flat)
                 + motion_Ts[:, None, :])                             # (B, N, 3)
    grid_cnl = (pos_bones - cnl_bbox_min_xyz[None, None, :]) \
        * cnl_bbox_scale_xyz[None, None, :] - 1.0
    mweights = motion_weights_vol[:-1]                                # (B, D, H, W)
    w_bn = jax.vmap(_grid_sample_3d_trilinear)(mweights, grid_cnl)    # (B, N)

    # motion-weight blend (matches _sample_motion_fields; clamp(min=1e-4))
    wsum = jnp.sum(w_bn, axis=0)                                      # (N,)
    x_skel = (jnp.sum(w_bn[:, :, None] * pos_bones, axis=0)
              / jnp.maximum(wsum, 1e-4)[:, None])                     # (N, 3)
    # fg_likelihood_mask (== wsum) is computed by the reference but never used.

    # positional embedding, padded to `width` rows, feature-major [C, N]
    feats = [x_skel]
    for i in range(CFG['multires']):
        freq = 2.0 ** i
        feats += [jnp.sin(x_skel * freq), jnp.cos(x_skel * freq)]
    x_embed = jnp.concatenate(feats, axis=-1)                         # (N, 27)
    x_embed_p = jnp.pad(
        x_embed, ((0, 0), (0, width - x_embed.shape[1]))).T           # (32, N)

    raw8 = cnl_mlp_pallas(x_embed_p, fmask.reshape(1, n_pts), params)  # (8, N)
    raw_sr = raw8[:4].reshape(4, n_samp, n_rays)                       # (4, S, R)

    # dists (tiny, precomputed outside the kernel), scaled by ||rays_d||
    dif = z_sr[1:, :] - z_sr[:-1, :]
    dists = jnp.concatenate(
        [dif, jnp.full((1, n_rays), 1e10, jnp.float32)], axis=0)       # (S, R)
    ray_norm = jnp.sqrt(jnp.sum(rays_d * rays_d, axis=-1))             # (R,)
    dists = dists * ray_norm[None, :]

    rgb_t, acc_t, depth_t = raw2outputs(raw_sr, dists, z_sr, bgcolor)
    return {'rgb': rgb_t.T, 'alpha': acc_t[0], 'depth': depth_t[0]}


def network_forward(params, rays, dst_Rs, dst_Ts, cnl_gtfms, motion_weights_priors,
                    dst_posevec, near, far, iter_val=1e7, *, vertices, out_sh,
                    dst_bbox, cnl_bbox_min_xyz, cnl_bbox_scale_xyz, bgcolor):
    dst_Rs = dst_Rs[None]
    dst_Ts = dst_Ts[None]
    dst_posevec = dst_posevec[None]
    cnl_gtfms = cnl_gtfms[None]
    motion_weights_priors = motion_weights_priors[None]

    if iter_val < CFG['non_rigid_kick_in_iter']:
        _non_rigid_mlp_input = jnp.zeros_like(dst_posevec) * dst_posevec
    else:
        _non_rigid_mlp_input = dst_posevec
    # (threaded through in the reference forward but never consumed by cnl_mlp)

    motion_scale_Rs, motion_Ts = motion_basis_computer(dst_Rs, dst_Ts, cnl_gtfms)
    motion_weights_vol = mweight_vol_decoder(params, motion_weights_priors)[0]

    rays_o, rays_d = rays
    rays_shape = rays_d.shape
    rays_o = rays_o.reshape(-1, 3).astype(jnp.float32)
    rays_d = rays_d.reshape(-1, 3).astype(jnp.float32)

    # NOTE: the reference chunks rays purely for memory; the Pallas grids here
    # already tile over points/rays, so one pass replaces the Python chunk loop.
    ret = _render_rays(params, rays_o, rays_d, near, far,
                       motion_scale_Rs[0], motion_Ts[0], motion_weights_vol,
                       cnl_bbox_min_xyz, cnl_bbox_scale_xyz, bgcolor,
                       vertices, out_sh, dst_bbox)

    out = {}
    for k, v in ret.items():
        out[k] = v.reshape(list(rays_shape[:-1]) + list(v.shape[1:]))
    return out


# ----------------------------------------------------------------------------
# Deterministic parameter init (MLP stored transposed/padded/stacked, bf16)
# ----------------------------------------------------------------------------
def init_params(key):
    n_bones = CFG['total_bones']
    e = CFG['mweight_embedding_size']
    v = CFG['mweight_volume_size']
    depth, width = CFG['cnl_mlp_depth'], CFG['cnl_mlp_width']
    skip = CFG['cnl_mlp_skips'][0]
    embed_dim = 3 + 3 * 2 * CFG['multires']
    assert embed_dim <= width

    keys = jax.random.split(key, depth + 4)
    w_stack, b_stack = [], []
    w_skip_x = None
    for i in range(depth):
        if i == 0:
            d_in = embed_dim
        elif i == skip:
            d_in = width + embed_dim      # concat order in reference: [h, x]
        else:
            d_in = width
        w = jax.random.normal(keys[i], (width, d_in), jnp.float32) / jnp.sqrt(d_in)
        b = jnp.zeros((width, 1), jnp.float32)
        if i == 0:
            w_h = jnp.pad(w, ((0, 0), (0, width - embed_dim)))   # zero cols 27..31
        elif i == skip:
            w_h = w[:, :width]                                    # multiplies h
            w_skip_x = jnp.pad(w[:, width:],
                               ((0, 0), (0, width - embed_dim)))  # multiplies x
        else:
            w_h = w
        w_stack.append(w_h)
        b_stack.append(b)

    w_out = jax.random.normal(keys[depth], (4, width), jnp.float32) / jnp.sqrt(width)
    w_out_p = jnp.pad(w_out, ((0, 4), (0, 0)))                    # (8, 32)
    b_out_p = jnp.zeros((8, 1), jnp.float32)

    # NOTE: nn.Embedding(6890, 16) in the original __init__ is never used in forward.
    return {
        'mlp_w': jnp.stack(w_stack).astype(jnp.bfloat16),         # (L, 32, 32)
        'mlp_b': jnp.stack(b_stack),                              # (L, 32, 1)
        'mlp_w_skip_x': w_skip_x.astype(jnp.bfloat16),            # (32, 32)
        'mlp_w_out': w_out_p.astype(jnp.bfloat16),                # (8, 32)
        'mlp_b_out': b_out_p,                                     # (8, 1)
        'mw_embedding': jax.random.normal(keys[depth + 1], (e,), jnp.float32),
        'mw_dec_w': 0.1 * jax.random.normal(
            keys[depth + 2], (e, (n_bones + 1) * v ** 3), jnp.float32),
        'mw_dec_b': jnp.zeros(((n_bones + 1) * v ** 3,), jnp.float32),
    }


# ----------------------------------------------------------------------------
if __name__ == "__main__":
    key = jax.random.PRNGKey(0)
    kp, *ks = jax.random.split(key, 10)
    params = init_params(kp)

    n_bones = CFG['total_bones']
    v = CFG['mweight_volume_size']
    n_rays = 64                        # 64 rays * 16 samples = 1024 points

    rays_o = jax.random.uniform(ks[0], (n_rays, 3), minval=-0.2, maxval=0.2)
    rays_d = jax.random.normal(ks[1], (n_rays, 3))
    rays_d = rays_d / jnp.maximum(
        jnp.linalg.norm(rays_d, axis=-1, keepdims=True), 1e-8)
    near = jnp.full((n_rays, 1), 0.1, jnp.float32)
    far = jnp.full((n_rays, 1), 1.0, jnp.float32)

    dst_Rs = jnp.tile(jnp.eye(3, dtype=jnp.float32)[None], (n_bones, 1, 1)) \
        + 0.01 * jax.random.normal(ks[2], (n_bones, 3, 3))
    dst_Ts = 0.1 * jax.random.normal(ks[3], (n_bones, 3))
    cnl_gtfms = jnp.tile(jnp.eye(4, dtype=jnp.float32)[None], (n_bones, 1, 1))
    cnl_gtfms = cnl_gtfms.at[:, :3, 3].set(
        0.05 * jax.random.normal(ks[4], (n_bones, 3)))
    motion_weights_priors = jax.random.uniform(
        ks[5], (n_bones + 1, v, v, v), minval=0.1, maxval=1.0)
    dst_posevec = jax.random.normal(ks[6], ((n_bones - 1) * 3,))

    out_sh = (16, 16, 16)
    vertices = jax.random.randint(ks[7], (300, 3), 2, 14)        # voxel coords
    dst_bbox = jnp.array([[-0.8, -0.8, -0.8], [0.8, 0.8, 0.8]], jnp.float32)
    cnl_bbox_min_xyz = jnp.array([-1.0, -1.0, -1.0], jnp.float32)
    cnl_bbox_scale_xyz = jnp.array([1.0, 1.0, 1.0], jnp.float32)
    bgcolor = jnp.array([255.0, 255.0, 255.0], jnp.float32)

    out = network_forward(
        params, (rays_o, rays_d), dst_Rs, dst_Ts, cnl_gtfms, motion_weights_priors,
        dst_posevec, near, far, iter_val=1e7,
        vertices=vertices, out_sh=out_sh, dst_bbox=dst_bbox,
        cnl_bbox_min_xyz=cnl_bbox_min_xyz, cnl_bbox_scale_xyz=cnl_bbox_scale_xyz,
        bgcolor=bgcolor)

    out = jax.tree_util.tree_map(jax.block_until_ready, out)
    assert out['rgb'].shape == (n_rays, 3)
    assert out['alpha'].shape == (n_rays,)
    assert out['depth'].shape == (n_rays,)
    assert all(bool(jnp.all(jnp.isfinite(x))) for x in out.values())
    print("KERNEL_OK")
</pallas_src>

<mosaic_0001>
module attributes {stable_mosaic.version = 11 : i64} {
  func.func @_dilate5_kernel(%arg0: i32, %arg1: memref<20x20x20xf32, #tpu.memory_space<vmem>>, %arg2: memref<16x16x16xf32, #tpu.memory_space<vmem>>) attributes {dimension_semantics = [#tpu.dimension_semantics<arbitrary>], iteration_bounds = array<i64: 1>, scalar_prefetch = 0 : i64, scratch_operands = 0 : i64, tpu.core_type = #tpu.core_type<tc>, window_params = [{pipeline_mode = #tpu.pipeline_mode<synchronous>, transform_indices = @transform_0, window_bounds = array<i64: 20, 20, 20>}, {pipeline_mode = #tpu.pipeline_mode<synchronous>, transform_indices = @transform_1, window_bounds = array<i64: 16, 16, 16>}]} {
    %c0 = arith.constant 0 : index
    %c0_0 = arith.constant 0 : index
    %c0_1 = arith.constant 0 : index
    %0 = vector.load %arg1[%c0, %c0_0, %c0_1] : memref<20x20x20xf32, #tpu.memory_space<vmem>>, vector<20x20x20xf32>
    %1 = vector.extract_strided_slice %0 {offsets = [0, 0, 0], sizes = [16, 20, 20], strides = [1, 1, 1]} : vector<20x20x20xf32> to vector<16x20x20xf32>
    %2 = vector.extract_strided_slice %0 {offsets = [1, 0, 0], sizes = [16, 20, 20], strides = [1, 1, 1]} : vector<20x20x20xf32> to vector<16x20x20xf32>
    %3 = arith.addf %1, %2 : vector<16x20x20xf32>
    %4 = vector.extract_strided_slice %0 {offsets = [2, 0, 0], sizes = [16, 20, 20], strides = [1, 1, 1]} : vector<20x20x20xf32> to vector<16x20x20xf32>
    %5 = arith.addf %3, %4 : vector<16x20x20xf32>
    %6 = vector.extract_strided_slice %0 {offsets = [3, 0, 0], sizes = [16, 20, 20], strides = [1, 1, 1]} : vector<20x20x20xf32> to vector<16x20x20xf32>
    %7 = arith.addf %5, %6 : vector<16x20x20xf32>
    %8 = vector.extract_strided_slice %0 {offsets = [4, 0, 0], sizes = [16, 20, 20], strides = [1, 1, 1]} : vector<20x20x20xf32> to vector<16x20x20xf32>
    %9 = arith.addf %7, %8 : vector<16x20x20xf32>
    %10 = vector.extract_strided_slice %9 {offsets = [0, 0, 0], sizes = [16, 16, 20], strides = [1, 1, 1]} : vector<16x20x20xf32> to vector<16x16x20xf32>
    %11 = vector.extract_strided_slice %9 {offsets = [0, 1, 0], sizes = [16, 16, 20], strides = [1, 1, 1]} : vector<16x20x20xf32> to vector<16x16x20xf32>
    %12 = arith.addf %10, %11 : vector<16x16x20xf32>
    %13 = vector.extract_strided_slice %9 {offsets = [0, 2, 0], sizes = [16, 16, 20], strides = [1, 1, 1]} : vector<16x20x20xf32> to vector<16x16x20xf32>
    %14 = arith.addf %12, %13 : vector<16x16x20xf32>
    %15 = vector.extract_strided_slice %9 {offsets = [0, 3, 0], sizes = [16, 16, 20], strides = [1, 1, 1]} : vector<16x20x20xf32> to vector<16x16x20xf32>
    %16 = arith.addf %14, %15 : vector<16x16x20xf32>
    %17 = vector.extract_strided_slice %9 {offsets = [0, 4, 0], sizes = [16, 16, 20], strides = [1, 1, 1]} : vector<16x20x20xf32> to vector<16x16x20xf32>
    %18 = arith.addf %16, %17 : vector<16x16x20xf32>
    %19 = vector.extract_strided_slice %18 {offsets = [0, 0, 0], sizes = [16, 16, 16], strides = [1, 1, 1]} : vector<16x16x20xf32> to vector<16x16x16xf32>
    %20 = vector.extract_strided_slice %18 {offsets = [0, 0, 1], sizes = [16, 16, 16], strides = [1, 1, 1]} : vector<16x16x20xf32> to vector<16x16x16xf32>
    %21 = arith.addf %19, %20 : vector<16x16x16xf32>
    %22 = vector.extract_strided_slice %18 {offsets = [0, 0, 2], sizes = [16, 16, 16], strides = [1, 1, 1]} : vector<16x16x20xf32> to vector<16x16x16xf32>
    %23 = arith.addf %21, %22 : vector<16x16x16xf32>
    %24 = vector.extract_strided_slice %18 {offsets = [0, 0, 3], sizes = [16, 16, 16], strides = [1, 1, 1]} : vector<16x16x20xf32> to vector<16x16x16xf32>
    %25 = arith.addf %23, %24 : vector<16x16x16xf32>
    %26 = vector.extract_strided_slice %18 {offsets = [0, 0, 4], sizes = [16, 16, 16], strides = [1, 1, 1]} : vector<16x16x20xf32> to vector<16x16x16xf32>
    %27 = arith.addf %25, %26 : vector<16x16x16xf32>
    %c0_2 = arith.constant 0 : index
    %c0_3 = arith.constant 0 : index
    %c0_4 = arith.constant 0 : index
    %28 = vector.load %arg2[%c0_2, %c0_3, %c0_4] : memref<16x16x16xf32, #tpu.memory_space<vmem>>, vector<16x16x16xf32>
    tpu.vector_store %arg2[%c0_2, %c0_3, %c0_4], %27 {strides = array<i32>} : memref<16x16x16xf32, #tpu.memory_space<vmem>>, vector<16x16x16xf32>,
    return
  }
  func.func @transform_0(%arg0: i32) -> (i32, i32, i32) {
    %c0_i32 = arith.constant 0 : i32
    %c0_i32_0 = arith.constant 0 : i32
    %c0_i32_1 = arith.constant 0 : i32
    %c0_i32_2 = arith.constant 0 : i32
    return %c0_i32, %c0_i32_0, %c0_i32_1 : i32, i32, i32
  }
  func.func @transform_1(%arg0: i32) -> (i32, i32, i32) {
    %c0_i32 = arith.constant 0 : i32
    %c0_i32_0 = arith.constant 0 : i32
    %c0_i32_1 = arith.constant 0 : i32
    %c0_i32_2 = arith.constant 0 : i32
    return %c0_i32, %c0_i32_0, %c0_i32_1 : i32, i32, i32
  }
}

</mosaic_0001>

<llo_original>
// kernel: tpu_custom_call.1
$region0: #{tpu_custom_call.1}
  #allocation0 [shape = 'u32[]', space=smem, size = 0x4, offset = 0x4, fixed_abs, tag = 'smem constant byte address 0x4 - core index']
  #allocation1 [shape = 'u32[72,128]{1,0:T(1,128)}', space=vmem, size = 0x9000, scoped, tag = 'internal scratch']
  %s0 = inlined_call_operand.hbm [shape: f32[20,20,20], index: 0, kind: input, shape index: {}]
  %s1 = inlined_call_operand.hbm [shape: f32[16,16,16], index: 1, kind: output, shape index: {}]
  %s2 = sld [smem:[#allocation0]]
  $region18: #{tpu_custom_call.1} parent=0
    _
  %s4 = ssub.s32 1, %s2
  %s5 = scalar_select 0, %s4, %s2
  $region1: #{tpu_custom_call.1} parent=0
    #allocation2 [shape = 'u8[245760]{0}', space=vmem, size = 0x3c000, scoped, tag = 'input window, operand 0, single buffered']
    #allocation3 [shape = 's32[1]{0}', space=sflag, size = 0x4, scoped, tag = 'scoped memory for tpu_custom_call.1']
    #allocation4 [shape = 's32[1]{0}', space=sflag, size = 0x4, scoped, tag = 'scoped memory for tpu_custom_call.1']
    #allocation5 [shape = 'u8[131072]{0}', space=vmem, size = 0x20000, scoped, tag = 'output window, operand 0, single buffered']
    %6 = vsyncpa [#allocation3], 0
    %7 = vsyncpa [#allocation4], 0
    // Predicated region
    $region2: #{tpu_custom_call.1} parent=1 // pred_check
      _
    $region3: #{tpu_custom_call.1} parent=1 // pred_check_branch
      %9 = sbr.rel (0) target = $region5
    $region4: #{tpu_custom_call.1} parent=1 // pred_region
      %11 = vsyncadd [#allocation3], 0
      %s12 = sshll.u32 %s0, 4
      %s13 = int_to_ptr.hbm [resolvable:$true] %s12
      %s14 = sshll.u32 [#allocation2], 4
      %s15 = int_to_ptr.vmem [resolvable:$true] %s14
      %20 = dma.hbm_to_vmem [thread:$0]  %s13, 7680, %s15, [#allocation3], 128, 128, 8
    $region5: #{tpu_custom_call.1} parent=1 // pred_fallthru
      _
    // Predicated region
    $region6: #{tpu_custom_call.1} parent=1 // pred_check
      _
    $region7: #{tpu_custom_call.1} parent=1 // pred_check_branch
      %22 = sbr.rel (0) target = $region9
    $region8: #{tpu_custom_call.1} parent=1 // pred_region
      %24 = dma.done [#allocation3], 7680
    $region9: #{tpu_custom_call.1} parent=1 // pred_fallthru
      _
    %v25 = vld [vmem:[#allocation2] sm:$0xff]
    %v26 = vld [vmem:[#allocation2 + $0x8] sm:$0xff]
    %v27 = vld [vmem:[#allocation2 + $0x10] sm:$0xf]
    %v28 = vld [vmem:[#allocation2 + $0x18] sm:$0xff]
    %v29 = vld [vmem:[#allocation2 + $0x20] sm:$0xff]
    %v30 = vld [vmem:[#allocation2 + $0x28] sm:$0xf]
    %v31 = vld [vmem:[#allocation2 + $0x30] sm:$0xff]
    %v32 = vld [vmem:[#allocation2 + $0x38] sm:$0xff]
    %v33 = vld [vmem:[#allocation2 + $0x40] sm:$0xf]
    %v34 = vld [vmem:[#allocation2 + $0x48] sm:$0xff]
    %v35 = vld [vmem:[#allocation2 + $0x50] sm:$0xff]
    %v36 = vld [vmem:[#allocation2 + $0x58] sm:$0xf]
    %v37 = vld [vmem:[#allocation2 + $0x60] sm:$0xff]
    %v38 = vld [vmem:[#allocation2 + $0x68] sm:$0xff]
    %v39 = vld [vmem:[#allocation2 + $0x70] sm:$0xf]
    %v40 = vld [vmem:[#allocation2 + $0x78] sm:$0xff]
    %v41 = vld [vmem:[#allocation2 + $0x80] sm:$0xff]
    %v42 = vld [vmem:[#allocation2 + $0x88] sm:$0xf]
    %v43 = vld [vmem:[#allocation2 + $0x90] sm:$0xff]
    %v44 = vld [vmem:[#allocation2 + $0x98] sm:$0xff]
    %v45 = vld [vmem:[#allocation2 + $0xa0] sm:$0xf]
    %v46 = vld [vmem:[#allocation2 + $0xa8] sm:$0xff]
    %v47 = vld [vmem:[#allocation2 + $0xb0] sm:$0xff]
    %v48 = vld [vmem:[#allocation2 + $0xb8] sm:$0xf]
    %v49 = vld [vmem:[#allocation2 + $0xc0] sm:$0xff]
    %v50 = vld [vmem:[#allocation2 + $0xc8] sm:$0xff]
    %v51 = vld [vmem:[#allocation2 + $0xd0] sm:$0xf]
    %v52 = vld [vmem:[#allocation2 + $0xd8] sm:$0xff]
    %v53 = vld [vmem:[#allocation2 + $0xe0] sm:$0xff]
    %v54 = vld [vmem:[#allocation2 + $0xe8] sm:$0xf]
    %v55 = vld [vmem:[#allocation2 + $0xf0] sm:$0xff]
    %v56 = vld [vmem:[#allocation2 + $0xf8] sm:$0xff]
    %v57 = vld [vmem:[#allocation2 + $0x100] sm:$0xf]
    %v58 = vld [vmem:[#allocation2 + $0x108] sm:$0xff]
    %v59 = vld [vmem:[#allocation2 + $0x110] sm:$0xff]
    %v60 = vld [vmem:[#allocation2 + $0x118] sm:$0xf]
    %v61 = vld [vmem:[#allocation2 + $0x120] sm:$0xff]
    %v62 = vld [vmem:[#allocation2 + $0x128] sm:$0xff]
    %v63 = vld [vmem:[#allocation2 + $0x130] sm:$0xf]
    %v64 = vld [vmem:[#allocation2 + $0x138] sm:$0xff]
    %v65 = vld [vmem:[#allocation2 + $0x140] sm:$0xff]
    %v66 = vld [vmem:[#allocation2 + $0x148] sm:$0xf]
    %v67 = vld [vmem:[#allocation2 + $0x150] sm:$0xff]
    %v68 = vld [vmem:[#allocation2 + $0x158] sm:$0xff]
    %v69 = vld [vmem:[#allocation2 + $0x160] sm:$0xf]
    %v70 = vld [vmem:[#allocation2 + $0x168] sm:$0xff]
    %v71 = vld [vmem:[#allocation2 + $0x170] sm:$0xff]
    %v72 = vld [vmem:[#allocation2 + $0x178] sm:$0xf]
    %v73 = vld [vmem:[#allocation2 + $0x180] sm:$0xff]
    %v74 = vld [vmem:[#allocation2 + $0x188] sm:$0xff]
    %v75 = vld [vmem:[#allocation2 + $0x190] sm:$0xf]
    %v76 = vld [vmem:[#allocation2 + $0x198] sm:$0xff]
    %v77 = vld [vmem:[#allocation2 + $0x1a0] sm:$0xff]
    %v78 = vld [vmem:[#allocation2 + $0x1a8] sm:$0xf]
    %v79 = vld [vmem:[#allocation2 + $0x1b0] sm:$0xff]
    %v80 = vld [vmem:[#allocation2 + $0x1b8] sm:$0xff]
    %v81 = vld [vmem:[#allocation2 + $0x1c0] sm:$0xf]
    %v82 = vld [vmem:[#allocation2 + $0x1c8] sm:$0xff]
    %v83 = vld [vmem:[#allocation2 + $0x1d0] sm:$0xff]
    %v84 = vld [vmem:[#allocation2 + $0x1d8] sm:$0xf]
    %v85 = vadd.f32 %v25, %v28
    %v86 = vadd.f32 %v26, %v29
    %v87 = vadd.f32 %v27, %v30
    %v88 = vadd.f32 %v28, %v31
    %v89 = vadd.f32 %v29, %v32
    %v90 = vadd.f32 %v30, %v33
    %v91 = vadd.f32 %v31, %v34
    %v92 = vadd.f32 %v32, %v35
    %v93 = vadd.f32 %v33, %v36
    %v94 = vadd.f32 %v34, %v37
    %v95 = vadd.f32 %v35, %v38
    %v96 = vadd.f32 %v36, %v39
    %v97 = vadd.f32 %v37, %v40
    %v98 = vadd.f32 %v38, %v41
    %v99 = vadd.f32 %v39, %v42
    %v100 = vadd.f32 %v40, %v43
    %v101 = vadd.f32 %v41, %v44
    %v102 = vadd.f32 %v42, %v45
    %v103 = vadd.f32 %v43, %v46
    %v104 = vadd.f32 %v44, %v47
    %v105 = vadd.f32 %v45, %v48
    %v106 = vadd.f32 %v46, %v49
    %v107 = vadd.f32 %v47, %v50
    %v108 = vadd.f32 %v48, %v51
    %v109 = vadd.f32 %v49, %v52
    %v110 = vadd.f32 %v50, %v53
    %v111 = vadd.f32 %v51, %v54
    %v112 = vadd.f32 %v52, %v55
    %v113 = vadd.f32 %v53, %v56
    %v114 = vadd.f32 %v54, %v57
    %v115 = vadd.f32 %v55, %v58
    %v116 = vadd.f32 %v56, %v59
    %v117 = vadd.f32 %v57, %v60
    %v118 = vadd.f32 %v58, %v61
    %v119 = vadd.f32 %v59, %v62
    %v120 = vadd.f32 %v60, %v63
    %v121 = vadd.f32 %v61, %v64
    %v122 = vadd.f32 %v62, %v65
    %v123 = vadd.f32 %v63, %v66
    %v124 = vadd.f32 %v64, %v67
    %v125 = vadd.f32 %v65, %v68
    %v126 = vadd.f32 %v66, %v69
    %v127 = vadd.f32 %v67, %v70
    %v128 = vadd.f32 %v68, %v71
    %v129 = vadd.f32 %v69, %v72
    %v130 = vadd.f32 %v70, %v73
    %v131 = vadd.f32 %v71, %v74
    %v132 = vadd.f32 %v72, %v75
    %v133 = vadd.f32 %v85, %v31
    %v134 = vadd.f32 %v86, %v32
    %v135 = vadd.f32 %v87, %v33
    %v136 = vadd.f32 %v88, %v34
    %v137 = vadd.f32 %v89, %v35
    %v138 = vadd.f32 %v90, %v36
    %v139 = vadd.f32 %v91, %v37
    %v140 = vadd.f32 %v92, %v38
    %v141 = vadd.f32 %v93, %v39
    %v142 = vadd.f32 %v94, %v40
    %v143 = vadd.f32 %v95, %v41
    %v144 = vadd.f32 %v96, %v42
    %v145 = vadd.f32 %v97, %v43
    %v146 = vadd.f32 %v98, %v44
    %v147 = vadd.f32 %v99, %v45
    %v148 = vadd.f32 %v100, %v46
    %v149 = vadd.f32 %v101, %v47
    %v150 = vadd.f32 %v102, %v48
    %v151 = vadd.f32 %v103, %v49
    %v152 = vadd.f32 %v104, %v50
    %v153 = vadd.f32 %v105, %v51
    %v154 = vadd.f32 %v106, %v52
    %v155 = vadd.f32 %v107, %v53
    %v156 = vadd.f32 %v108, %v54
    %v157 = vadd.f32 %v109, %v55
    %v158 = vadd.f32 %v110, %v56
    %v159 = vadd.f32 %v111, %v57
    %v160 = vadd.f32 %v112, %v58
    %v161 = vadd.f32 %v113, %v59
    %v162 = vadd.f32 %v114, %v60
    %v163 = vadd.f32 %v115, %v61
    %v164 = vadd.f32 %v116, %v62
    %v165 = vadd.f32 %v117, %v63
    %v166 = vadd.f32 %v118, %v64
    %v167 = vadd.f32 %v119, %v65
    %v168 = vadd.f32 %v120, %v66
    %v169 = vadd.f32 %v121, %v67
    %v170 = vadd.f32 %v122, %v68
    %v171 = vadd.f32 %v123, %v69
    %v172 = vadd.f32 %v124, %v70
    %v173 = vadd.f32 %v125, %v71
    %v174 = vadd.f32 %v126, %v72
    %v175 = vadd.f32 %v127, %v73
    %v176 = vadd.f32 %v128, %v74
    %v177 = vadd.f32 %v129, %v75
    %v178 = vadd.f32 %v130, %v76
    %v179 = vadd.f32 %v131, %v77
    %v180 = vadd.f32 %v132, %v78
    %v181 = vadd.f32 %v133, %v34
    %v182 = vadd.f32 %v134, %v35
    %v183 = vadd.f32 %v135, %v36
    %v184 = vadd.f32 %v136, %v37
    %v185 = vadd.f32 %v137, %v38
    %v186 = vadd.f32 %v138, %v39
    %v187 = vadd.f32 %v139, %v40
    %v188 = vadd.f32 %v140, %v41
    %v189 = vadd.f32 %v141, %v42
    %v190 = vadd.f32 %v142, %v43
    %v191 = vadd.f32 %v143, %v44
    %v192 = vadd.f32 %v144, %v45
    %v193 = vadd.f32 %v145, %v46
    %v194 = vadd.f32 %v146, %v47
    %v195 = vadd.f32 %v147, %v48
    %v196 = vadd.f32 %v148, %v49
    %v197 = vadd.f32 %v149, %v50
    %v198 = vadd.f32 %v150, %v51
    %v199 = vadd.f32 %v151, %v52
    %v200 = vadd.f32 %v152, %v53
    %v201 = vadd.f32 %v153, %v54
    %v202 = vadd.f32 %v154, %v55
    %v203 = vadd.f32 %v155, %v56
    %v204 = vadd.f32 %v156, %v57
    %v205 = vadd.f32 %v157, %v58
    %v206 = vadd.f32 %v158, %v59
    %v207 = vadd.f32 %v159, %v60
    %v208 = vadd.f32 %v160, %v61
    %v209 = vadd.f32 %v161, %v62
    %v210 = vadd.f32 %v162, %v63
    %v211 = vadd.f32 %v163, %v64
    %v212 = vadd.f32 %v164, %v65
    %v213 = vadd.f32 %v165, %v66
    %v214 = vadd.f32 %v166, %v67
    %v215 = vadd.f32 %v167, %v68
    %v216 = vadd.f32 %v168, %v69
    %v217 = vadd.f32 %v169, %v70
    %v218 = vadd.f32 %v170, %v71
    %v219 = vadd.f32 %v171, %v72
    %v220 = vadd.f32 %v172, %v73
    %v221 = vadd.f32 %v173, %v74
    %v222 = vadd.f32 %v174, %v75
    %v223 = vadd.f32 %v175, %v76
    %v224 = vadd.f32 %v176, %v77
    %v225 = vadd.f32 %v177, %v78
    %v226 = vadd.f32 %v178, %v79
    %v227 = vadd.f32 %v179, %v80
    %v228 = vadd.f32 %v180, %v81
    %v229 = vadd.f32 %v181, %v37
    %v230 = vadd.f32 %v182, %v38
    %v231 = vadd.f32 %v183, %v39
    %v232 = vadd.f32 %v184, %v40
    %v233 = vadd.f32 %v185, %v41
    %v234 = vadd.f32 %v186, %v42
    %v235 = vadd.f32 %v187, %v43
    %v236 = vadd.f32 %v188, %v44
    %v237 = vadd.f32 %v189, %v45
    %v238 = vadd.f32 %v190, %v46
    %v239 = vadd.f32 %v191, %v47
    %v240 = vadd.f32 %v192, %v48
    %v241 = vadd.f32 %v193, %v49
    %v242 = vadd.f32 %v194, %v50
    %v243 = vadd.f32 %v195, %v51
    %v244 = vadd.f32 %v196, %v52
    %v245 = vadd.f32 %v197, %v53
    %v246 = vadd.f32 %v198, %v54
    %v247 = vadd.f32 %v199, %v55
    %v248 = vadd.f32 %v200, %v56
    %v249 = vadd.f32 %v201, %v57
    %v250 = vadd.f32 %v202, %v58
    %v251 = vadd.f32 %v203, %v59
    %v252 = vadd.f32 %v204, %v60
    %v253 = vadd.f32 %v205, %v61
    %v254 = vadd.f32 %v206, %v62
    %v255 = vadd.f32 %v207, %v63
    %v256 = vadd.f32 %v208, %v64
    %v257 = vadd.f32 %v209, %v65
    %v258 = vadd.f32 %v210, %v66
    %v259 = vadd.f32 %v211, %v67
    %v260 = vadd.f32 %v212, %v68
    %v261 = vadd.f32 %v213, %v69
    %v262 = vadd.f32 %v214, %v70
    %v263 = vadd.f32 %v215, %v71
    %v264 = vadd.f32 %v216, %v72
    %v265 = vadd.f32 %v217, %v73
    %v266 = vadd.f32 %v218, %v74
    %v267 = vadd.f32 %v219, %v75
    %v268 = vadd.f32 %v220, %v76
    %v269 = vadd.f32 %v221, %v77
    %v270 = vadd.f32 %v222, %v78
    %v271 = vadd.f32 %v223, %v79
    %v272 = vadd.f32 %v224, %v80
    %v273 = vadd.f32 %v225, %v81
    %v274 = vadd.f32 %v226, %v82
    %v275 = vadd.f32 %v227, %v83
    %v276 = vadd.f32 %v228, %v84
    %vm325 = vcmask 1046528
    %v326 = vrot.slane %v229, 1
    %v327 = vrot.slane %v230, 1
    %v328 = vsel %vm325, %v326, %v327
    %v329 = vrot.slane %v231, 1
    %v330 = vsel %vm325, %v327, %v329
    %v331 = vrot.slane %v232, 1
    %v332 = vrot.slane %v233, 1
    %v333 = vsel %vm325, %v331, %v332
    %v334 = vrot.slane %v234, 1
    %v335 = vsel %vm325, %v332, %v334
    %v336 = vrot.slane %v235, 1
    %v337 = vrot.slane %v236, 1
    %v338 = vsel %vm325, %v336, %v337
    %v339 = vrot.slane %v237, 1
    %v340 = vsel %vm325, %v337, %v339
    %v341 = vrot.slane %v238, 1
    %v342 = vrot.slane %v239, 1
    %v343 = vsel %vm325, %v341, %v342
    %v344 = vrot.slane %v240, 1
    %v345 = vsel %vm325, %v342, %v344
    %v346 = vrot.slane %v241, 1
    %v347 = vrot.slane %v242, 1
    %v348 = vsel %vm325, %v346, %v347
    %v349 = vrot.slane %v243, 1
    %v350 = vsel %vm325, %v347, %v349
    %v351 = vrot.slane %v244, 1
    %v352 = vrot.slane %v245, 1
    %v353 = vsel %vm325, %v351, %v352
    %v354 = vrot.slane %v246, 1
    %v355 = vsel %vm325, %v352, %v354
    %v356 = vrot.slane %v247, 1
    %v357 = vrot.slane %v248, 1
    %v358 = vsel %vm325, %v356, %v357
    %v359 = vrot.slane %v249, 1
    %v360 = vsel %vm325, %v357, %v359
    %v361 = vrot.slane %v250, 1
    %v362 = vrot.slane %v251, 1
    %v363 = vsel %vm325, %v361, %v362
    %v364 = vrot.slane %v252, 1
    %v365 = vsel %vm325, %v362, %v364
    %v366 = vrot.slane %v253, 1
    %v367 = vrot.slane %v254, 1
    %v368 = vsel %vm325, %v366, %v367
    %v369 = vrot.slane %v255, 1
    %v370 = vsel %vm325, %v367, %v369
    %v371 = vrot.slane %v256, 1
    %v372 = vrot.slane %v257, 1
    %v373 = vsel %vm325, %v371, %v372
    %v374 = vrot.slane %v258, 1
    %v375 = vsel %vm325, %v372, %v374
    %v376 = vrot.slane %v259, 1
    %v377 = vrot.slane %v260, 1
    %v378 = vsel %vm325, %v376, %v377
    %v379 = vrot.slane %v261, 1
    %v380 = vsel %vm325, %v377, %v379
    %v381 = vrot.slane %v262, 1
    %v382 = vrot.slane %v263, 1
    %v383 = vsel %vm325, %v381, %v382
    %v384 = vrot.slane %v264, 1
    %v385 = vsel %vm325, %v382, %v384
    %v386 = vrot.slane %v265, 1
    %v387 = vrot.slane %v266, 1
    %v388 = vsel %vm325, %v386, %v387
    %v389 = vrot.slane %v267, 1
    %v390 = vsel %vm325, %v387, %v389
    %v391 = vrot.slane %v268, 1
    %v392 = vrot.slane %v269, 1
    %v393 = vsel %vm325, %v391, %v392
    %v394 = vrot.slane %v270, 1
    %v395 = vsel %vm325, %v392, %v394
    %v396 = vrot.slane %v271, 1
    %v397 = vrot.slane %v272, 1
    %v398 = vsel %vm325, %v396, %v397
    %v399 = vrot.slane %v273, 1
    %v400 = vsel %vm325, %v397, %v399
    %v401 = vrot.slane %v274, 1
    %v402 = vrot.slane %v275, 1
    %v403 = vsel %vm325, %v401, %v402
    %v404 = vrot.slane %v276, 1
    %v405 = vsel %vm325, %v402, %v404
    %v438 = vadd.f32 %v229, %v328
    %v439 = vadd.f32 %v230, %v330
    %v440 = vadd.f32 %v232, %v333
    %v441 = vadd.f32 %v233, %v335
    %v442 = vadd.f32 %v235, %v338
    %v443 = vadd.f32 %v236, %v340
    %v444 = vadd.f32 %v238, %v343
    %v445 = vadd.f32 %v239, %v345
    %v446 = vadd.f32 %v241, %v348
    %v447 = vadd.f32 %v242, %v350
    %v448 = vadd.f32 %v244, %v353
    %v449 = vadd.f32 %v245, %v355
    %v450 = vadd.f32 %v247, %v358
    %v451 = vadd.f32 %v248, %v360
    %v452 = vadd.f32 %v250, %v363
    %v453 = vadd.f32 %v251, %v365
    %v454 = vadd.f32 %v253, %v368
    %v455 = vadd.f32 %v254, %v370
    %v456 = vadd.f32 %v256, %v373
    %v457 = vadd.f32 %v257, %v375
    %v458 = vadd.f32 %v259, %v378
    %v459 = vadd.f32 %v260, %v380
    %v460 = vadd.f32 %v262, %v383
    %v461 = vadd.f32 %v263, %v385
    %v462 = vadd.f32 %v265, %v388
    %v463 = vadd.f32 %v266, %v390
    %v464 = vadd.f32 %v268, %v393
    %v465 = vadd.f32 %v269, %v395
    %v466 = vadd.f32 %v271, %v398
    %v467 = vadd.f32 %v272, %v400
    %v468 = vadd.f32 %v274, %v403
    %v469 = vadd.f32 %v275, %v405
    %vm470 = vcmask 1045504
    %v471 = vrot.slane %v229, 2
    %v472 = vrot.slane %v230, 2
    %v473 = vsel %vm470, %v471, %v472
    %v474 = vrot.slane %v231, 2
    %v475 = vsel %vm470, %v472, %v474
    %v476 = vrot.slane %v232, 2
    %v477 = vrot.slane %v233, 2
    %v478 = vsel %vm470, %v476, %v477
    %v479 = vrot.slane %v234, 2
    %v480 = vsel %vm470, %v477, %v479
    %v481 = vrot.slane %v235, 2
    %v482 = vrot.slane %v236, 2
    %v483 = vsel %vm470, %v481, %v482
    %v484 = vrot.slane %v237, 2
    %v485 = vsel %vm470, %v482, %v484
    %v486 = vrot.slane %v238, 2
    %v487 = vrot.slane %v239, 2
    %v488 = vsel %vm470, %v486, %v487
    %v489 = vrot.slane %v240, 2
    %v490 = vsel %vm470, %v487, %v489
    %v491 = vrot.slane %v241, 2
    %v492 = vrot.slane %v242, 2
    %v493 = vsel %vm470, %v491, %v492
    %v494 = vrot.slane %v243, 2
    %v495 = vsel %vm470, %v492, %v494
    %v496 = vrot.slane %v244, 2
    %v497 = vrot.slane %v245, 2
    %v498 = vsel %vm470, %v496, %v497
    %v499 = vrot.slane %v246, 2
    %v500 = vsel %vm470, %v497, %v499
    %v501 = vrot.slane %v247, 2
    %v502 = vrot.slane %v248, 2
    %v503 = vsel %vm470, %v501, %v502
    %v504 = vrot.slane %v249, 2
    %v505 = vsel %vm470, %v502, %v504
    %v506 = vrot.slane %v250, 2
    %v507 = vrot.slane %v251, 2
    %v508 = vsel %vm470, %v506, %v507
    %v509 = vrot.slane %v252, 2
    %v510 = vsel %vm470, %v507, %v509
    %v511 = vrot.slane %v253, 2
    %v512 = vrot.slane %v254, 2
    %v513 = vsel %vm470, %v511, %v512
    %v514 = vrot.slane %v255, 2
    %v515 = vsel %vm470, %v512, %v514
    %v516 = vrot.slane %v256, 2
    %v517 = vrot.slane %v257, 2
    %v518 = vsel %vm470, %v516, %v517
    %v519 = vrot.slane %v258, 2
    %v520 = vsel %vm470, %v517, %v519
    %v521 = vrot.slane %v259, 2
    %v522 = vrot.slane %v260, 2
    %v523 = vsel %vm470, %v521, %v522
    %v524 = vrot.slane %v261, 2
    %v525 = vsel %vm470, %v522, %v524
    %v526 = vrot.slane %v262, 2
    %v527 = vrot.slane %v263, 2
    %v528 = vsel %vm470, %v526, %v527
    %v529 = vrot.slane %v264, 2
    %v530 = vsel %vm470, %v527, %v529
    %v531 = vrot.slane %v265, 2
    %v532 = vrot.slane %v266, 2
    %v533 = vsel %vm470, %v531, %v532
    %v534 = vrot.slane %v267, 2
    %v535 = vsel %vm470, %v532, %v534
    %v536 = vrot.slane %v268, 2
    %v537 = vrot.slane %v269, 2
    %v538 = vsel %vm470, %v536, %v537
    %v539 = vrot.slane %v270, 2
    %v540 = vsel %vm470, %v537, %v539
    %v541 = vrot.slane %v271, 2
    %v542 = vrot.slane %v272, 2
    %v543 = vsel %vm470, %v541, %v542
    %v544 = vrot.slane %v273, 2
    %v545 = vsel %vm470, %v542, %v544
    %v546 = vrot.slane %v274, 2
    %v547 = vrot.slane %v275, 2
    %v548 = vsel %vm470, %v546, %v547
    %v549 = vrot.slane %v276, 2
    %v550 = vsel %vm470, %v547, %v549
    %v583 = vadd.f32 %v438, %v473
    %v584 = vadd.f32 %v439, %v475
    %v585 = vadd.f32 %v440, %v478
    %v586 = vadd.f32 %v441, %v480
    %v587 = vadd.f32 %v442, %v483
    %v588 = vadd.f32 %v443, %v485
    %v589 = vadd.f32 %v444, %v488
    %v590 = vadd.f32 %v445, %v490
    %v591 = vadd.f32 %v446, %v493
    %v592 = vadd.f32 %v447, %v495
    %v593 = vadd.f32 %v448, %v498
    %v594 = vadd.f32 %v449, %v500
    %v595 = vadd.f32 %v450, %v503
    %v596 = vadd.f32 %v451, %v505
    %v597 = vadd.f32 %v452, %v508
    %v598 = vadd.f32 %v453, %v510
    %v599 = vadd.f32 %v454, %v513
    %v600 = vadd.f32 %v455, %v515
    %v601 = vadd.f32 %v456, %v518
    %v602 = vadd.f32 %v457, %v520
    %v603 = vadd.f32 %v458, %v523
    %v604 = vadd.f32 %v459, %v525
    %v605 = vadd.f32 %v460, %v528
    %v606 = vadd.f32 %v461, %v530
    %v607 = vadd.f32 %v462, %v533
    %v608 = vadd.f32 %v463, %v535
    %v609 = vadd.f32 %v464, %v538
    %v610 = vadd.f32 %v465, %v540
    %v611 = vadd.f32 %v466, %v543
    %v612 = vadd.f32 %v467, %v545
    %v613 = vadd.f32 %v468, %v548
    %v614 = vadd.f32 %v469, %v550
    %vm615 = vcmask 1044480
    %v616 = vrot.slane %v229, 3
    %v617 = vrot.slane %v230, 3
    %v618 = vsel %vm615, %v616, %v617
    %v619 = vrot.slane %v231, 3
    %v620 = vsel %vm615, %v617, %v619
    %v621 = vrot.slane %v232, 3
    %v622 = vrot.slane %v233, 3
    %v623 = vsel %vm615, %v621, %v622
    %v624 = vrot.slane %v234, 3
    %v625 = vsel %vm615, %v622, %v624
    %v626 = vrot.slane %v235, 3
    %v627 = vrot.slane %v236, 3
    %v628 = vsel %vm615, %v626, %v627
    %v629 = vrot.slane %v237, 3
    %v630 = vsel %vm615, %v627, %v629
    %v631 = vrot.slane %v238, 3
    %v632 = vrot.slane %v239, 3
    %v633 = vsel %vm615, %v631, %v632
    %v634 = vrot.slane %v240, 3
    %v635 = vsel %vm615, %v632, %v634
    %v636 = vrot.slane %v241, 3
    %v637 = vrot.slane %v242, 3
    %v638 = vsel %vm615, %v636, %v637
    %v639 = vrot.slane %v243, 3
    %v640 = vsel %vm615, %v637, %v639
    %v641 = vrot.slane %v244, 3
    %v642 = vrot.slane %v245, 3
    %v643 = vsel %vm615, %v641, %v642
    %v644 = vrot.slane %v246, 3
    %v645 = vsel %vm615, %v642, %v644
    %v646 = vrot.slane %v247, 3
    %v647 = vrot.slane %v248, 3
    %v648 = vsel %vm615, %v646, %v647
    %v649 = vrot.slane %v249, 3
    %v650 = vsel %vm615, %v647, %v649
    %v651 = vrot.slane %v250, 3
    %v652 = vrot.slane %v251, 3
    %v653 = vsel %vm615, %v651, %v652
    %v654 = vrot.slane %v252, 3
    %v655 = vsel %vm615, %v652, %v654
    %v656 = vrot.slane %v253, 3
    %v657 = vrot.slane %v254, 3
    %v658 = vsel %vm615, %v656, %v657
    %v659 = vrot.slane %v255, 3
    %v660 = vsel %vm615, %v657, %v659
    %v661 = vrot.slane %v256, 3
    %v662 = vrot.slane %v257, 3
    %v663 = vsel %vm615, %v661, %v662
    %v664 = vrot.slane %v258, 3
    %v665 = vsel %vm615, %v662, %v664
    %v666 = vrot.slane %v259, 3
    %v667 = vrot.slane %v260, 3
    %v668 = vsel %vm615, %v666, %v667
    %v669 = vrot.slane %v261, 3
    %v670 = vsel %vm615, %v667, %v669
    %v671 = vrot.slane %v262, 3
    %v672 = vrot.slane %v263, 3
    %v673 = vsel %vm615, %v671, %v672
    %v674 = vrot.slane %v264, 3
    %v675 = vsel %vm615, %v672, %v674
    %v676 = vrot.slane %v265, 3
    %v677 = vrot.slane %v266, 3
    %v678 = vsel %vm615, %v676, %v677
    %v679 = vrot.slane %v267, 3
    %v680 = vsel %vm615, %v677, %v679
    %v681 = vrot.slane %v268, 3
    %v682 = vrot.slane %v269, 3
    %v683 = vsel %vm615, %v681, %v682
    %v684 = vrot.slane %v270, 3
    %v685 = vsel %vm615, %v682, %v684
    %v686 = vrot.slane %v271, 3
    %v687 = vrot.slane %v272, 3
    %v688 = vsel %vm615, %v686, %v687
    %v689 = vrot.slane %v273, 3
    %v690 = vsel %vm615, %v687, %v689
    %v691 = vrot.slane %v274, 3
    %v692 = vrot.slane %v275, 3
    %v693 = vsel %vm615, %v691, %v692
    %v694 = vrot.slane %v276, 3
    %v695 = vsel %vm615, %v692, %v694
    %v728 = vadd.f32 %v583, %v618
    %v729 = vadd.f32 %v584, %v620
    %v730 = vadd.f32 %v585, %v623
    %v731 = vadd.f32 %v586, %v625
    %v732 = vadd.f32 %v587, %v628
    %v733 = vadd.f32 %v588, %v630
    %v734 = vadd.f32 %v589, %v633
    %v735 = vadd.f32 %v590, %v635
    %v736 = vadd.f32 %v591, %v638
    %v737 = vadd.f32 %v592, %v640
    %v738 = vadd.f32 %v593, %v643
    %v739 = vadd.f32 %v594, %v645
    %v740 = vadd.f32 %v595, %v648
    %v741 = vadd.f32 %v596, %v650
    %v742 = vadd.f32 %v597, %v653
    %v743 = vadd.f32 %v598, %v655
    %v744 = vadd.f32 %v599, %v658
    %v745 = vadd.f32 %v600, %v660
    %v746 = vadd.f32 %v601, %v663
    %v747 = vadd.f32 %v602, %v665
    %v748 = vadd.f32 %v603, %v668
    %v749 = vadd.f32 %v604, %v670
    %v750 = vadd.f32 %v605, %v673
    %v751 = vadd.f32 %v606, %v675
    %v752 = vadd.f32 %v607, %v678
    %v753 = vadd.f32 %v608, %v680
    %v754 = vadd.f32 %v609, %v683
    %v755 = vadd.f32 %v610, %v685
    %v756 = vadd.f32 %v611, %v688
    %v757 = vadd.f32 %v612, %v690
    %v758 = vadd.f32 %v613, %v693
    %v759 = vadd.f32 %v614, %v695
    %vm760 = vcmask 1043456
    %v761 = vrot.slane %v229, 4
    %v762 = vrot.slane %v230, 4
    %v763 = vsel %vm760, %v761, %v762
    %v764 = vrot.slane %v231, 4
    %v765 = vsel %vm760, %v762, %v764
    %v766 = vrot.slane %v232, 4
    %v767 = vrot.slane %v233, 4
    %v768 = vsel %vm760, %v766, %v767
    %v769 = vrot.slane %v234, 4
    %v770 = vsel %vm760, %v767, %v769
    %v771 = vrot.slane %v235, 4
    %v772 = vrot.slane %v236, 4
    %v773 = vsel %vm760, %v771, %v772
    %v774 = vrot.slane %v237, 4
    %v775 = vsel %vm760, %v772, %v774
    %v776 = vrot.slane %v238, 4
    %v777 = vrot.slane %v239, 4
    %v778 = vsel %vm760, %v776, %v777
    %v779 = vrot.slane %v240, 4
    %v780 = vsel %vm760, %v777, %v779
    %v781 = vrot.slane %v241, 4
    %v782 = vrot.slane %v242, 4
    %v783 = vsel %vm760, %v781, %v782
    %v784 = vrot.slane %v243, 4
    %v785 = vsel %vm760, %v782, %v784
    %v786 = vrot.slane %v244, 4
    %v787 = vrot.slane %v245, 4
    %v788 = vsel %vm760, %v786, %v787
    %v789 = vrot.slane %v246, 4
    %v790 = vsel %vm760, %v787, %v789
    %v791 = vrot.slane %v247, 4
    %v792 = vrot.slane %v248, 4
    %v793 = vsel %vm760, %v791, %v792
    %v794 = vrot.slane %v249, 4
    %v795 = vsel %vm760, %v792, %v794
    %v796 = vrot.slane %v250, 4
    %v797 = vrot.slane %v251, 4
    %v798 = vsel %vm760, %v796, %v797
    %v799 = vrot.slane %v252, 4
    %v800 = vsel %vm760, %v797, %v799
    %v801 = vrot.slane %v253, 4
    %v802 = vrot.slane %v254, 4
    %v803 = vsel %vm760, %v801, %v802
    %v804 = vrot.slane %v255, 4
    %v805 = vsel %vm760, %v802, %v804
    %v806 = vrot.slane %v256, 4
    %v807 = vrot.slane %v257, 4
    %v808 = vsel %vm760, %v806, %v807
    %v809 = vrot.slane %v258, 4
    %v810 = vsel %vm760, %v807, %v809
    %v811 = vrot.slane %v259, 4
    %v812 = vrot.slane %v260, 4
    %v813 = vsel %vm760, %v811, %v812
    %v814 = vrot.slane %v261, 4
    %v815 = vsel %vm760, %v812, %v814
    %v816 = vrot.slane %v262, 4
    %v817 = vrot.slane %v263, 4
    %v818 = vsel %vm760, %v816, %v817
    %v819 = vrot.slane %v264, 4
    %v820 = vsel %vm760, %v817, %v819
    %v821 = vrot.slane %v265, 4
    %v822 = vrot.slane %v266, 4
    %v823 = vsel %vm760, %v821, %v822
    %v824 = vrot.slane %v267, 4
    %v825 = vsel %vm760, %v822, %v824
    %v826 = vrot.slane %v268, 4
    %v827 = vrot.slane %v269, 4
    %v828 = vsel %vm760, %v826, %v827
    %v829 = vrot.slane %v270, 4
    %v830 = vsel %vm760, %v827, %v829
    %v831 = vrot.slane %v271, 4
    %v832 = vrot.slane %v272, 4
    %v833 = vsel %vm760, %v831, %v832
    %v834 = vrot.slane %v273, 4
    %v835 = vsel %vm760, %v832, %v834
    %v836 = vrot.slane %v274, 4
    %v837 = vrot.slane %v275, 4
    %v838 = vsel %vm760, %v836, %v837
    %v839 = vrot.slane %v276, 4
    %v840 = vsel %vm760, %v837, %v839
    %v873 = vadd.f32 %v728, %v763
    %v874 = vadd.f32 %v729, %v765
    %v875 = vadd.f32 %v730, %v768
    %v876 = vadd.f32 %v731, %v770
    %v877 = vadd.f32 %v732, %v773
    %v878 = vadd.f32 %v733, %v775
    %v879 = vadd.f32 %v734, %v778
    %v880 = vadd.f32 %v735, %v780
    %v881 = vadd.f32 %v736, %v783
    %v882 = vadd.f32 %v737, %v785
    %v883 = vadd.f32 %v738, %v788
    %v884 = vadd.f32 %v739, %v790
    %v885 = vadd.f32 %v740, %v793
    %v886 = vadd.f32 %v741, %v795
    %v887 = vadd.f32 %v742, %v798
    %v888 = vadd.f32 %v743, %v800
    %v889 = vadd.f32 %v744, %v803
    %v890 = vadd.f32 %v745, %v805
    %v891 = vadd.f32 %v746, %v808
    %v892 = vadd.f32 %v747, %v810
    %v893 = vadd.f32 %v748, %v813
    %v894 = vadd.f32 %v749, %v815
    %v895 = vadd.f32 %v750, %v818
    %v896 = vadd.f32 %v751, %v820
    %v897 = vadd.f32 %v752, %v823
    %v898 = vadd.f32 %v753, %v825
    %v899 = vadd.f32 %v754, %v828
    %v900 = vadd.f32 %v755, %v830
    %v901 = vadd.f32 %v756, %v833
    %v902 = vadd.f32 %v757, %v835
    %v903 = vadd.f32 %v758, %v838
    %v904 = vadd.f32 %v759, %v840
    %937 = vrot.lane.b32.xlu0 %v873, 127
    %v938 = vpop.permute.xlu0 %937
    %939 = vrot.lane.b32.xlu0 %v874, 127
    %v940 = vpop.permute.xlu0 %939
    %941 = vrot.lane.b32.xlu0 %v875, 127
    %v942 = vpop.permute.xlu0 %941
    %943 = vrot.lane.b32.xlu0 %v876, 127
    %v944 = vpop.permute.xlu0 %943
    %945 = vrot.lane.b32.xlu0 %v877, 127
    %v946 = vpop.permute.xlu0 %945
    %947 = vrot.lane.b32.xlu0 %v878, 127
    %v948 = vpop.permute.xlu0 %947
    %949 = vrot.lane.b32.xlu0 %v879, 127
    %v950 = vpop.permute.xlu0 %949
    %951 = vrot.lane.b32.xlu0 %v880, 127
    %v952 = vpop.permute.xlu0 %951
    %953 = vrot.lane.b32.xlu0 %v881, 127
    %v954 = vpop.permute.xlu0 %953
    %955 = vrot.lane.b32.xlu0 %v882, 127
    %v956 = vpop.permute.xlu0 %955
    %957 = vrot.lane.b32.xlu0 %v883, 127
    %v958 = vpop.permute.xlu0 %957
    %959 = vrot.lane.b32.xlu0 %v884, 127
    %v960 = vpop.permute.xlu0 %959
    %961 = vrot.lane.b32.xlu0 %v885, 127
    %v962 = vpop.permute.xlu0 %961
    %963 = vrot.lane.b32.xlu0 %v886, 127
    %v964 = vpop.permute.xlu0 %963
    %965 = vrot.lane.b32.xlu0 %v887, 127
    %v966 = vpop.permute.xlu0 %965
    %967 = vrot.lane.b32.xlu0 %v888, 127
    %v968 = vpop.permute.xlu0 %967
    %969 = vrot.lane.b32.xlu0 %v889, 127
    %v970 = vpop.permute.xlu0 %969
    %971 = vrot.lane.b32.xlu0 %v890, 127
    %v972 = vpop.permute.xlu0 %971
    %973 = vrot.lane.b32.xlu0 %v891, 127
    %v974 = vpop.permute.xlu0 %973
    %975 = vrot.lane.b32.xlu0 %v892, 127
    %v976 = vpop.permute.xlu0 %975
    %977 = vrot.lane.b32.xlu0 %v893, 127
    %v978 = vpop.permute.xlu0 %977
    %979 = vrot.lane.b32.xlu0 %v894, 127
    %v980 = vpop.permute.xlu0 %979
    %981 = vrot.lane.b32.xlu0 %v895, 127
    %v982 = vpop.permute.xlu0 %981
    %983 = vrot.lane.b32.xlu0 %v896, 127
    %v984 = vpop.permute.xlu0 %983
    %985 = vrot.lane.b32.xlu0 %v897, 127
    %v986 = vpop.permute.xlu0 %985
    %987 = vrot.lane.b32.xlu0 %v898, 127
    %v988 = vpop.permute.xlu0 %987
    %989 = vrot.lane.b32.xlu0 %v899, 127
    %v990 = vpop.permute.xlu0 %989
    %991 = vrot.lane.b32.xlu0 %v900, 127
    %v992 = vpop.permute.xlu0 %991
    %993 = vrot.lane.b32.xlu0 %v901, 127
    %v994 = vpop.permute.xlu0 %993
    %995 = vrot.lane.b32.xlu0 %v902, 127
    %v996 = vpop.permute.xlu0 %995
    %997 = vrot.lane.b32.xlu0 %v903, 127
    %v998 = vpop.permute.xlu0 %997
    %999 = vrot.lane.b32.xlu0 %v904, 127
    %v1000 = vpop.permute.xlu0 %999
    %v1033 = vadd.f32 %v873, %v938
    %v1034 = vadd.f32 %v874, %v940
    %v1035 = vadd.f32 %v875, %v942
    %v1036 = vadd.f32 %v876, %v944
    %v1037 = vadd.f32 %v877, %v946
    %v1038 = vadd.f32 %v878, %v948
    %v1039 = vadd.f32 %v879, %v950
    %v1040 = vadd.f32 %v880, %v952
    %v1041 = vadd.f32 %v881, %v954
    %v1042 = vadd.f32 %v882, %v956
    %v1043 = vadd.f32 %v883, %v958
    %v1044 = vadd.f32 %v884, %v960
    %v1045 = vadd.f32 %v885, %v962
    %v1046 = vadd.f32 %v886, %v964
    %v1047 = vadd.f32 %v887, %v966
    %v1048 = vadd.f32 %v888, %v968
    %v1049 = vadd.f32 %v889, %v970
    %v1050 = vadd.f32 %v890, %v972
    %v1051 = vadd.f32 %v891, %v974
    %v1052 = vadd.f32 %v892, %v976
    %v1053 = vadd.f32 %v893, %v978
    %v1054 = vadd.f32 %v894, %v980
    %v1055 = vadd.f32 %v895, %v982
    %v1056 = vadd.f32 %v896, %v984
    %v1057 = vadd.f32 %v897, %v986
    %v1058 = vadd.f32 %v898, %v988
    %v1059 = vadd.f32 %v899, %v990
    %v1060 = vadd.f32 %v900, %v992
    %v1061 = vadd.f32 %v901, %v994
    %v1062 = vadd.f32 %v902, %v996
    %v1063 = vadd.f32 %v903, %v998
    %v1064 = vadd.f32 %v904, %v1000
    %1065 = vrot.lane.b32.xlu0 %v873, 126
    %v1066 = vpop.permute.xlu0 %1065
    %1067 = vrot.lane.b32.xlu0 %v874, 126
    %v1068 = vpop.permute.xlu0 %1067
    %1069 = vrot.lane.b32.xlu0 %v875, 126
    %v1070 = vpop.permute.xlu0 %1069
    %1071 = vrot.lane.b32.xlu0 %v876, 126
    %v1072 = vpop.permute.xlu0 %1071
    %1073 = vrot.lane.b32.xlu0 %v877, 126
    %v1074 = vpop.permute.xlu0 %1073
    %1075 = vrot.lane.b32.xlu0 %v878, 126
    %v1076 = vpop.permute.xlu0 %1075
    %1077 = vrot.lane.b32.xlu0 %v879, 126
    %v1078 = vpop.permute.xlu0 %1077
    %1079 = vrot.lane.b32.xlu0 %v880, 126
    %v1080 = vpop.permute.xlu0 %1079
    %1081 = vrot.lane.b32.xlu0 %v881, 126
    %v1082 = vpop.permute.xlu0 %1081
    %1083 = vrot.lane.b32.xlu0 %v882, 126
    %v1084 = vpop.permute.xlu0 %1083
    %1085 = vrot.lane.b32.xlu0 %v883, 126
    %v1086 = vpop.permute.xlu0 %1085
    %1087 = vrot.lane.b32.xlu0 %v884, 126
    %v1088 = vpop.permute.xlu0 %1087
    %1089 = vrot.lane.b32.xlu0 %v885, 126
    %v1090 = vpop.permute.xlu0 %1089
    %1091 = vrot.lane.b32.xlu0 %v886, 126
    %v1092 = vpop.permute.xlu0 %1091
    %1093 = vrot.lane.b32.xlu0 %v887, 126
    %v1094 = vpop.permute.xlu0 %1093
    %1095 = vrot.lane.b32.xlu0 %v888, 126
    %v1096 = vpop.permute.xlu0 %1095
    %1097 = vrot.lane.b32.xlu0 %v889, 126
    %v1098 = vpop.permute.xlu0 %1097
    %1099 = vrot.lane.b32.xlu0 %v890, 126
    %v1100 = vpop.permute.xlu0 %1099
    %1101 = vrot.lane.b32.xlu0 %v891, 126
    %v1102 = vpop.permute.xlu0 %1101
    %1103 = vrot.lane.b32.xlu0 %v892, 126
    %v1104 = vpop.permute.xlu0 %1103
    %1105 = vrot.lane.b32.xlu0 %v893, 126
    %v1106 = vpop.permute.xlu0 %1105
    %1107 = vrot.lane.b32.xlu0 %v894, 126
    %v1108 = vpop.permute.xlu0 %1107
    %1109 = vrot.lane.b32.xlu0 %v895, 126
    %v1110 = vpop.permute.xlu0 %1109
    %1111 = vrot.lane.b32.xlu0 %v896, 126
    %v1112 = vpop.permute.xlu0 %1111
    %1113 = vrot.lane.b32.xlu0 %v897, 126
    %v1114 = vpop.permute.xlu0 %1113
    %1115 = vrot.lane.b32.xlu0 %v898, 126
    %v1116 = vpop.permute.xlu0 %1115
    %1117 = vrot.lane.b32.xlu0 %v899, 126
    %v1118 = vpop.permute.xlu0 %1117
    %1119 = vrot.lane.b32.xlu0 %v900, 126
    %v1120 = vpop.permute.xlu0 %1119
    %1121 = vrot.lane.b32.xlu0 %v901, 126
    %v1122 = vpop.permute.xlu0 %1121
    %1123 = vrot.lane.b32.xlu0 %v902, 126
    %v1124 = vpop.permute.xlu0 %1123
    %1125 = vrot.lane.b32.xlu0 %v903, 126
    %v1126 = vpop.permute.xlu0 %1125
    %1127 = vrot.lane.b32.xlu0 %v904, 126
    %v1128 = vpop.permute.xlu0 %1127
    %v1161 = vadd.f32 %v1033, %v1066
    %v1162 = vadd.f32 %v1034, %v1068
    %v1163 = vadd.f32 %v1035, %v1070
    %v1164 = vadd.f32 %v1036, %v1072
    %v1165 = vadd.f32 %v1037, %v1074
    %v1166 = vadd.f32 %v1038, %v1076
    %v1167 = vadd.f32 %v1039, %v1078
    %v1168 = vadd.f32 %v1040, %v1080
    %v1169 = vadd.f32 %v1041, %v1082
    %v1170 = vadd.f32 %v1042, %v1084
    %v1171 = vadd.f32 %v1043, %v1086
    %v1172 = vadd.f32 %v1044, %v1088
    %v1173 = vadd.f32 %v1045, %v1090
    %v1174 = vadd.f32 %v1046, %v1092
    %v1175 = vadd.f32 %v1047, %v1094
    %v1176 = vadd.f32 %v1048, %v1096
    %v1177 = vadd.f32 %v1049, %v1098
    %v1178 = vadd.f32 %v1050, %v1100
    %v1179 = vadd.f32 %v1051, %v1102
    %v1180 = vadd.f32 %v1052, %v1104
    %v1181 = vadd.f32 %v1053, %v1106
    %v1182 = vadd.f32 %v1054, %v1108
    %v1183 = vadd.f32 %v1055, %v1110
    %v1184 = vadd.f32 %v1056, %v1112
    %v1185 = vadd.f32 %v1057, %v1114
    %v1186 = vadd.f32 %v1058, %v1116
    %v1187 = vadd.f32 %v1059, %v1118
    %v1188 = vadd.f32 %v1060, %v1120
    %v1189 = vadd.f32 %v1061, %v1122
    %v1190 = vadd.f32 %v1062, %v1124
    %v1191 = vadd.f32 %v1063, %v1126
    %v1192 = vadd.f32 %v1064, %v1128
    %1193 = vrot.lane.b32.xlu0 %v873, 125
    %v1194 = vpop.permute.xlu0 %1193
    %1195 = vrot.lane.b32.xlu0 %v874, 125
    %v1196 = vpop.permute.xlu0 %1195
    %1197 = vrot.lane.b32.xlu0 %v875, 125
    %v1198 = vpop.permute.xlu0 %1197
    %1199 = vrot.lane.b32.xlu0 %v876, 125
    %v1200 = vpop.permute.xlu0 %1199
    %1201 = vrot.lane.b32.xlu0 %v877, 125
    %v1202 = vpop.permute.xlu0 %1201
    %1203 = vrot.lane.b32.xlu0 %v878, 125
    %v1204 = vpop.permute.xlu0 %1203
    %1205 = vrot.lane.b32.xlu0 %v879, 125
    %v1206 = vpop.permute.xlu0 %1205
    %1207 = vrot.lane.b32.xlu0 %v880, 125
    %v1208 = vpop.permute.xlu0 %1207
    %1209 = vrot.lane.b32.xlu0 %v881, 125
    %v1210 = vpop.permute.xlu0 %1209
    %1211 = vrot.lane.b32.xlu0 %v882, 125
    %v1212 = vpop.permute.xlu0 %1211
    %1213 = vrot.lane.b32.xlu0 %v883, 125
    %v1214 = vpop.permute.xlu0 %1213
    %1215 = vrot.lane.b32.xlu0 %v884, 125
    %v1216 = vpop.permute.xlu0 %1215
    %1217 = vrot.lane.b32.xlu0 %v885, 125
    %v1218 = vpop.permute.xlu0 %1217
    %1219 = vrot.lane.b32.xlu0 %v886, 125
    %v1220 = vpop.permute.xlu0 %1219
    %1221 = vrot.lane.b32.xlu0 %v887, 125
    %v1222 = vpop.permute.xlu0 %1221
    %1223 = vrot.lane.b32.xlu0 %v888, 125
    %v1224 = vpop.permute.xlu0 %1223
    %1225 = vrot.lane.b32.xlu0 %v889, 125
    %v1226 = vpop.permute.xlu0 %1225
    %1227 = vrot.lane.b32.xlu0 %v890, 125
    %v1228 = vpop.permute.xlu0 %1227
    %1229 = vrot.lane.b32.xlu0 %v891, 125
    %v1230 = vpop.permute.xlu0 %1229
    %1231 = vrot.lane.b32.xlu0 %v892, 125
    %v1232 = vpop.permute.xlu0 %1231
    %1233 = vrot.lane.b32.xlu0 %v893, 125
    %v1234 = vpop.permute.xlu0 %1233
    %1235 = vrot.lane.b32.xlu0 %v894, 125
    %v1236 = vpop.permute.xlu0 %1235
    %1237 = vrot.lane.b32.xlu0 %v895, 125
    %v1238 = vpop.permute.xlu0 %1237
    %1239 = vrot.lane.b32.xlu0 %v896, 125
    %v1240 = vpop.permute.xlu0 %1239
    %1241 = vrot.lane.b32.xlu0 %v897, 125
    %v1242 = vpop.permute.xlu0 %1241
    %1243 = vrot.lane.b32.xlu0 %v898, 125
    %v1244 = vpop.permute.xlu0 %1243
    %1245 = vrot.lane.b32.xlu0 %v899, 125
    %v1246 = vpop.permute.xlu0 %1245
    %1247 = vrot.lane.b32.xlu0 %v900, 125
    %v1248 = vpop.permute.xlu0 %1247
    %1249 = vrot.lane.b32.xlu0 %v901, 125
    %v1250 = vpop.permute.xlu0 %1249
    %1251 = vrot.lane.b32.xlu0 %v902, 125
    %v1252 = vpop.permute.xlu0 %1251
    %1253 = vrot.lane.b32.xlu0 %v903, 125
    %v1254 = vpop.permute.xlu0 %1253
    %1255 = vrot.lane.b32.xlu0 %v904, 125
    %v1256 = vpop.permute.xlu0 %1255
    %v1289 = vadd.f32 %v1161, %v1194
    %v1290 = vadd.f32 %v1162, %v1196
    %v1291 = vadd.f32 %v1163, %v1198
    %v1292 = vadd.f32 %v1164, %v1200
    %v1293 = vadd.f32 %v1165, %v1202
    %v1294 = vadd.f32 %v1166, %v1204
    %v1295 = vadd.f32 %v1167, %v1206
    %v1296 = vadd.f32 %v1168, %v1208
    %v1297 = vadd.f32 %v1169, %v1210
    %v1298 = vadd.f32 %v1170, %v1212
    %v1299 = vadd.f32 %v1171, %v1214
    %v1300 = vadd.f32 %v1172, %v1216
    %v1301 = vadd.f32 %v1173, %v1218
    %v1302 = vadd.f32 %v1174, %v1220
    %v1303 = vadd.f32 %v1175, %v1222
    %v1304 = vadd.f32 %v1176, %v1224
    %v1305 = vadd.f32 %v1177, %v1226
    %v1306 = vadd.f32 %v1178, %v1228
    %v1307 = vadd.f32 %v1179, %v1230
    %v1308 = vadd.f32 %v1180, %v1232
    %v1309 = vadd.f32 %v1181, %v1234
    %v1310 = vadd.f32 %v1182, %v1236
    %v1311 = vadd.f32 %v1183, %v1238
    %v1312 = vadd.f32 %v1184, %v1240
    %v1313 = vadd.f32 %v1185, %v1242
    %v1314 = vadd.f32 %v1186, %v1244
    %v1315 = vadd.f32 %v1187, %v1246
    %v1316 = vadd.f32 %v1188, %v1248
    %v1317 = vadd.f32 %v1189, %v1250
    %v1318 = vadd.f32 %v1190, %v1252
    %v1319 = vadd.f32 %v1191, %v1254
    %v1320 = vadd.f32 %v1192, %v1256
    %1321 = vrot.lane.b32.xlu0 %v873, 124
    %v1322 = vpop.permute.xlu0 %1321
    %1323 = vrot.lane.b32.xlu0 %v874, 124
    %v1324 = vpop.permute.xlu0 %1323
    %1325 = vrot.lane.b32.xlu0 %v875, 124
    %v1326 = vpop.permute.xlu0 %1325
    %1327 = vrot.lane.b32.xlu0 %v876, 124
    %v1328 = vpop.permute.xlu0 %1327
    %1329 = vrot.lane.b32.xlu0 %v877, 124
    %v1330 = vpop.permute.xlu0 %1329
    %1331 = vrot.lane.b32.xlu0 %v878, 124
    %v1332 = vpop.permute.xlu0 %1331
    %1333 = vrot.lane.b32.xlu0 %v879, 124
    %v1334 = vpop.permute.xlu0 %1333
    %1335 = vrot.lane.b32.xlu0 %v880, 124
    %v1336 = vpop.permute.xlu0 %1335
    %1337 = vrot.lane.b32.xlu0 %v881, 124
    %v1338 = vpop.permute.xlu0 %1337
    %1339 = vrot.lane.b32.xlu0 %v882, 124
    %v1340 = vpop.permute.xlu0 %1339
    %1341 = vrot.lane.b32.xlu0 %v883, 124
    %v1342 = vpop.permute.xlu0 %1341
    %1343 = vrot.lane.b32.xlu0 %v884, 124
    %v1344 = vpop.permute.xlu0 %1343
    %1345 = vrot.lane.b32.xlu0 %v885, 124
    %v1346 = vpop.permute.xlu0 %1345
    %1347 = vrot.lane.b32.xlu0 %v886, 124
    %v1348 = vpop.permute.xlu0 %1347
    %1349 = vrot.lane.b32.xlu0 %v887, 124
    %v1350 = vpop.permute.xlu0 %1349
    %1351 = vrot.lane.b32.xlu0 %v888, 124
    %v1352 = vpop.permute.xlu0 %1351
    %1353 = vrot.lane.b32.xlu0 %v889, 124
    %v1354 = vpop.permute.xlu0 %1353
    %1355 = vrot.lane.b32.xlu0 %v890, 124
    %v1356 = vpop.permute.xlu0 %1355
    %1357 = vrot.lane.b32.xlu0 %v891, 124
    %v1358 = vpop.permute.xlu0 %1357
    %1359 = vrot.lane.b32.xlu0 %v892, 124
    %v1360 = vpop.permute.xlu0 %1359
    %1361 = vrot.lane.b32.xlu0 %v893, 124
    %v1362 = vpop.permute.xlu0 %1361
    %1363 = vrot.lane.b32.xlu0 %v894, 124
    %v1364 = vpop.permute.xlu0 %1363
    %1365 = vrot.lane.b32.xlu0 %v895, 124
    %v1366 = vpop.permute.xlu0 %1365
    %1367 = vrot.lane.b32.xlu0 %v896, 124
    %v1368 = vpop.permute.xlu0 %1367
    %1369 = vrot.lane.b32.xlu0 %v897, 124
    %v1370 = vpop.permute.xlu0 %1369
    %1371 = vrot.lane.b32.xlu0 %v898, 124
    %v1372 = vpop.permute.xlu0 %1371
    %1373 = vrot.lane.b32.xlu0 %v899, 124
    %v1374 = vpop.permute.xlu0 %1373
    %1375 = vrot.lane.b32.xlu0 %v900, 124
    %v1376 = vpop.permute.xlu0 %1375
    %1377 = vrot.lane.b32.xlu0 %v901, 124
    %v1378 = vpop.permute.xlu0 %1377
    %1379 = vrot.lane.b32.xlu0 %v902, 124
    %v1380 = vpop.permute.xlu0 %1379
    %1381 = vrot.lane.b32.xlu0 %v903, 124
    %v1382 = vpop.permute.xlu0 %1381
    %1383 = vrot.lane.b32.xlu0 %v904, 124
    %v1384 = vpop.permute.xlu0 %1383
    %v1417 = vadd.f32 %v1289, %v1322
    %v1418 = vadd.f32 %v1290, %v1324
    %v1419 = vadd.f32 %v1291, %v1326
    %v1420 = vadd.f32 %v1292, %v1328
    %v1421 = vadd.f32 %v1293, %v1330
    %v1422 = vadd.f32 %v1294, %v1332
    %v1423 = vadd.f32 %v1295, %v1334
    %v1424 = vadd.f32 %v1296, %v1336
    %v1425 = vadd.f32 %v1297, %v1338
    %v1426 = vadd.f32 %v1298, %v1340
    %v1427 = vadd.f32 %v1299, %v1342
    %v1428 = vadd.f32 %v1300, %v1344
    %v1429 = vadd.f32 %v1301, %v1346
    %v1430 = vadd.f32 %v1302, %v1348
    %v1431 = vadd.f32 %v1303, %v1350
    %v1432 = vadd.f32 %v1304, %v1352
    %v1433 = vadd.f32 %v1305, %v1354
    %v1434 = vadd.f32 %v1306, %v1356
    %v1435 = vadd.f32 %v1307, %v1358
    %v1436 = vadd.f32 %v1308, %v1360
    %v1437 = vadd.f32 %v1309, %v1362
    %v1438 = vadd.f32 %v1310, %v1364
    %v1439 = vadd.f32 %v1311, %v1366
    %v1440 = vadd.f32 %v1312, %v1368
    %v1441 = vadd.f32 %v1313, %v1370
    %v1442 = vadd.f32 %v1314, %v1372
    %v1443 = vadd.f32 %v1315, %v1374
    %v1444 = vadd.f32 %v1316, %v1376
    %v1445 = vadd.f32 %v1317, %v1378
    %v1446 = vadd.f32 %v1318, %v1380
    %v1447 = vadd.f32 %v1319, %v1382
    %v1448 = vadd.f32 %v1320, %v1384
    %vm1449 = vcmask 130048
    %1450 = vst.msk [vmem:[#allocation5] sm:$0xff] %vm1449, %v1417
    %1451 = vst.msk [vmem:[#allocation5 + $0x8] sm:$0xff] %vm1449, %v1418
    %1452 = vst.msk [vmem:[#allocation5 + $0x10] sm:$0xff] %vm1449, %v1419
    %1453 = vst.msk [vmem:[#allocation5 + $0x18] sm:$0xff] %vm1449, %v1420
    %1454 = vst.msk [vmem:[#allocation5 + $0x20] sm:$0xff] %vm1449, %v1421
    %1455 = vst.msk [vmem:[#allocation5 + $0x28] sm:$0xff] %vm1449, %v1422
    %1456 = vst.msk [vmem:[#allocation5 + $0x30] sm:$0xff] %vm1449, %v1423
    %1457 = vst.msk [vmem:[#allocation5 + $0x38] sm:$0xff] %vm1449, %v1424
    %1458 = vst.msk [vmem:[#allocation5 + $0x40] sm:$0xff] %vm1449, %v1425
    %1459 = vst.msk [vmem:[#allocation5 + $0x48] sm:$0xff] %vm1449, %v1426
    %1460 = vst.msk [vmem:[#allocation5 + $0x50] sm:$0xff] %vm1449, %v1427
    %1461 = vst.msk [vmem:[#allocation5 + $0x58] sm:$0xff] %vm1449, %v1428
    %1462 = vst.msk [vmem:[#allocation5 + $0x60] sm:$0xff] %vm1449, %v1429
    %1463 = vst.msk [vmem:[#allocation5 + $0x68] sm:$0xff] %vm1449, %v1430
    %1464 = vst.msk [vmem:[#allocation5 + $0x70] sm:$0xff] %vm1449, %v1431
    %1465 = vst.msk [vmem:[#allocation5 + $0x78] sm:$0xff] %vm1449, %v1432
    %1466 = vst.msk [vmem:[#allocation5 + $0x80] sm:$0xff] %vm1449, %v1433
    %1467 = vst.msk [vmem:[#allocation5 + $0x88] sm:$0xff] %vm1449, %v1434
    %1468 = vst.msk [vmem:[#allocation5 + $0x90] sm:$0xff] %vm1449, %v1435
    %1469 = vst.msk [vmem:[#allocation5 + $0x98] sm:$0xff] %vm1449, %v1436
    %1470 = vst.msk [vmem:[#allocation5 + $0xa0] sm:$0xff] %vm1449, %v1437
    %1471 = vst.msk [vmem:[#allocation5 + $0xa8] sm:$0xff] %vm1449, %v1438
    %1472 = vst.msk [vmem:[#allocation5 + $0xb0] sm:$0xff] %vm1449, %v1439
    %1473 = vst.msk [vmem:[#allocation5 + $0xb8] sm:$0xff] %vm1449, %v1440
    %1474 = vst.msk [vmem:[#allocation5 + $0xc0] sm:$0xff] %vm1449, %v1441
    %1475 = vst.msk [vmem:[#allocation5 + $0xc8] sm:$0xff] %vm1449, %v1442
    %1476 = vst.msk [vmem:[#allocation5 + $0xd0] sm:$0xff] %vm1449, %v1443
    %1477 = vst.msk [vmem:[#allocation5 + $0xd8] sm:$0xff] %vm1449, %v1444
    %1478 = vst.msk [vmem:[#allocation5 + $0xe0] sm:$0xff] %vm1449, %v1445
    %1479 = vst.msk [vmem:[#allocation5 + $0xe8] sm:$0xff] %vm1449, %v1446
    %1480 = vst.msk [vmem:[#allocation5 + $0xf0] sm:$0xff] %vm1449, %v1447
    %1481 = vst.msk [vmem:[#allocation5 + $0xf8] sm:$0xff] %vm1449, %v1448
    // Predicated region
    $region10: #{tpu_custom_call.1} parent=1 // pred_check
      _
    $region11: #{tpu_custom_call.1} parent=1 // pred_check_branch
      %1483 = sbr.rel (0) target = $region13
    $region12: #{tpu_custom_call.1} parent=1 // pred_region
      %1485 = vsyncadd [#allocation4], 0
      %s1486 = sshll.u32 [#allocation5], 4
      %s1487 = int_to_ptr.vmem [resolvable:$true] %s1486
      %s1488 = sshll.u32 %s1, 4
      %s1489 = int_to_ptr.hbm [resolvable:$true] %s1488
      %1494 = dma.vmem_to_hbm [thread:$0]  %s1487, 4096, %s1489, [#allocation4], 128, 128, 8
    $region13: #{tpu_custom_call.1} parent=1 // pred_fallthru
      _
    // Predicated region
    $region14: #{tpu_custom_call.1} parent=1 // pred_check
      _
    $region15: #{tpu_custom_call.1} parent=1 // pred_check_branch
      %1496 = sbr.rel (0) target = $region17
    $region16: #{tpu_custom_call.1} parent=1 // pred_region
      %1498 = dma.done [#allocation4], 4096
    $region17: #{tpu_custom_call.1} parent=1 // pred_fallthru
      _
    %1499 = vsyncpa [#allocation3], 1
    %1500 = vsyncpa [#allocation4], 1

</llo_original>
